<compile_context>
chip_gen: v7x
topology: tpu7x:2x2x1
jax: 0.10.0
libtpu: 0.0.40
codegen_flags: <defaults>
</compile_context>

<pallas_src>
import jax
import jax.numpy as jnp
from jax.experimental import pallas as pl
from jax.experimental.pallas import tpu as pltpu


def _round_up(x, m):
    return (x + m - 1) // m * m


def _vmem_budget_bytes():
    """Generation-aware VMEM budget for the kernel working set.

    v7x has 64 MiB per TensorCore, v5e/v6e have 128 MiB.  Use 3/4 of whatever
    the chip reports (leaves headroom for compiler scratch); fall back to a
    v7x-safe value if the query is unavailable.
    """
    try:
        cap = int(pltpu.get_tpu_info().vmem_capacity_bytes)
    except Exception:
        cap = 64 << 20
    return max(16 << 20, (cap * 3) // 4)


def _pick_tile_b(batch, per_row_pipelined, per_row_scratch, resident_bytes,
                 budget):
    """Largest batch tile (multiple of 16; bf16 vregs pack [16,128] sublanes)
    whose working set fits `budget`.

    per_row_pipelined : bytes/row that are double-buffered by the pipeline
                        (x tile + out tile).
    per_row_scratch   : bytes/row of single-copy intermediates (f32 h, bf16 h,
                        f32 fc2 accumulator).
    resident_bytes    : weights/biases resident across the batch sweep.
    """
    b16 = _round_up(max(batch, 1), 16)
    cap = min(1024, b16)
    cands = [c for c in (1024, 512, 256, 128, 64, 32, 16) if c <= cap]
    if not cands or cands[0] != cap:
        cands.insert(0, cap)
    for t in cands:
        if resident_bytes + t * (2 * per_row_pipelined + per_row_scratch) <= budget:
            return t
    # TODO(synk): if even a 16-row tile does not fit (huge hid), fall back to a
    #             K/hid-tiled grid with an accumulator instead of failing VMEM.
    return 16


def expert_kernel(x_ref, w1_ref, b1_ref, w2_ref, b2_ref, o_ref):
    """Shared body for both layouts: relu(x@W1 + b1) @ W2 + b2."""
    # fc1 on the MXU: bf16 inputs, f32 accumulation.
    h = jnp.dot(x_ref[...], w1_ref[...], preferred_element_type=jnp.float32)
    # bias add + ReLU stay in f32 on the VPU (v5e has no bf16 VPU).
    h = jnp.maximum(h + b1_ref[...], 0.0)
    # dropout(p=0.3) -> identity in eval mode (omitted).
    # fc2 on the MXU: downcast activations only right before the dot.
    o = jnp.dot(h.astype(w2_ref.dtype), w2_ref[...],
                preferred_element_type=jnp.float32)
    o_ref[...] = (o + b2_ref[...]).astype(o_ref.dtype)


def prepare_experts(w1, b1, w2, b2, *, compute_dtype=jnp.bfloat16):
    """One-time (outside the hot path) pad / cast / pack of the static weights.

    w1: [E, in, hid]   b1: [E, hid]
    w2: [E, hid, out]  b2: [E, out]
    Returns a plan dict consumed by experts_apply().
    """
    E, in_dim, hid = w1.shape
    out_dim = w2.shape[2]
    itemsize = jnp.dtype(compute_dtype).itemsize
    budget = _vmem_budget_bytes()

    # Lane / contraction dims padded to multiples of 128 (lane-dense loads,
    # unmasked output stores).  NOTE: v6e/v7x MXUs are 256-wide, but a
    # 128-aligned operand completes in the same number of MXU passes, so we
    # keep 128 alignment (native on v5e) rather than padding further.
    in_p = _round_up(in_dim, 128)
    hid_p = _round_up(hid, 128)
    out_p = _round_up(out_dim, 128)

    eh, eo = E * hid, E * out_dim
    eh_p = _round_up(eh, 128)
    eo_p = _round_up(eo, 128)

    # MXU column-work per batch row for each layout; pick the cheaper one.
    packed_work = in_p * eh_p + eh_p * eo_p
    general_work = E * (in_p * hid_p + hid_p * out_p)
    packed_weight_bytes = (2 * (in_p * eh_p + eh_p * eo_p) * itemsize
                           + 2 * (eh_p + eo_p) * 4)
    packed_min_ws = packed_weight_bytes + 16 * (
        2 * (in_p * itemsize + eo_p * 4)
        + eh_p * 4 + eh_p * itemsize + eo_p * 4)
    use_packed = (packed_work <= general_work) and (packed_min_ws <= budget)

    plan = dict(E=E, in_dim=in_dim, hid=hid, out_dim=out_dim, in_p=in_p,
                compute_dtype=compute_dtype, budget=int(budget))

    if use_packed:
        # --- lane-packed layout: all experts share one fc1 matmul, fc2 is a
        # single block-diagonal matmul, output lanes are [e*out:(e+1)*out] ---
        w1_cat = jnp.transpose(w1.astype(compute_dtype), (1, 0, 2)
                               ).reshape(in_dim, eh)
        w1p = jnp.zeros((in_p, eh_p), compute_dtype).at[:in_dim, :eh].set(w1_cat)
        b1p = jnp.zeros((1, eh_p), jnp.float32).at[0, :eh].set(
            b1.astype(jnp.float32).reshape(eh))
        w2p = jnp.zeros((eh_p, eo_p), compute_dtype)
        for e in range(E):
            w2p = w2p.at[e * hid:(e + 1) * hid,
                         e * out_dim:(e + 1) * out_dim].set(
                w2[e].astype(compute_dtype))
        b2p = jnp.zeros((1, eo_p), jnp.float32).at[0, :eo].set(
            b2.astype(jnp.float32).reshape(eo))
        plan.update(mode="packed", eh_p=eh_p, eo_p=eo_p,
                    w1p=w1p, b1p=b1p, w2p=w2p, b2p=b2p)
    else:
        # --- general layout: per-expert 128-padded tiles, weights resident
        # per expert (grid axis 0), batch streamed (grid axis 1) ---
        w1p = jnp.zeros((E, in_p, hid_p), compute_dtype
                        ).at[:, :in_dim, :hid].set(w1.astype(compute_dtype))
        b1p = jnp.zeros((E, 1, hid_p), jnp.float32
                        ).at[:, 0, :hid].set(b1.astype(jnp.float32))
        w2p = jnp.zeros((E, hid_p, out_p), compute_dtype
                        ).at[:, :hid, :out_dim].set(w2.astype(compute_dtype))
        b2p = jnp.zeros((E, 1, out_p), jnp.float32
                        ).at[:, 0, :out_dim].set(b2.astype(jnp.float32))
        plan.update(mode="general", hid_p=hid_p, out_p=out_p,
                    w1p=w1p, b1p=b1p, w2p=w2p, b2p=b2p)
    return plan


def experts_apply(plan, x, *, tile_b=None, out_dtype=None):
    """Apply the prepared experts to x[B, in] -> [E, B, out]."""
    B, in_dim = x.shape
    assert in_dim == plan["in_dim"]
    E, out_dim = plan["E"], plan["out_dim"]
    in_p = plan["in_p"]
    cdt = plan["compute_dtype"]
    itemsize = jnp.dtype(cdt).itemsize
    budget = plan["budget"]
    if out_dtype is None:
        out_dtype = x.dtype   # module semantics; pass bf16 to halve writeback
    out_isz = jnp.dtype(out_dtype).itemsize
    b16 = _round_up(B, 16)

    if plan["mode"] == "packed":
        eh_p, eo_p = plan["eh_p"], plan["eo_p"]
        w1p, b1p, w2p, b2p = plan["w1p"], plan["b1p"], plan["w2p"], plan["b2p"]
        resident = 2 * (w1p.nbytes + w2p.nbytes + b1p.nbytes + b2p.nbytes)
        per_row_pipe = in_p * itemsize + eo_p * out_isz
        per_row_scr = eh_p * 4 + eh_p * itemsize + eo_p * 4
        if tile_b is None:
            tile_b = _pick_tile_b(B, per_row_pipe, per_row_scr, resident, budget)
            # v7x megacore: force >=2 grid points when the batch allows it so
            # both TensorCores get work.
            if _round_up(B, tile_b) // tile_b < 2 and b16 >= 32:
                tile_b = _round_up((b16 + 1) // 2, 16)
        B_p = _round_up(B, tile_b)
        xp = jnp.zeros((B_p, in_p), cdt).at[:B, :in_dim].set(x.astype(cdt))
        cost = pl.CostEstimate(
            flops=2 * B_p * (in_p * eh_p + eh_p * eo_p),
            transcendentals=0,
            bytes_accessed=int(xp.nbytes + w1p.nbytes + w2p.nbytes
                               + b1p.nbytes + b2p.nbytes
                               + B_p * eo_p * out_isz))
        out_padded = pl.pallas_call(
            expert_kernel,
            out_shape=jax.ShapeDtypeStruct((B_p, eo_p), out_dtype),
            grid_spec=pltpu.PrefetchScalarGridSpec(
                num_scalar_prefetch=0,
                grid=(B_p // tile_b,),
                in_specs=[
                    pl.BlockSpec((tile_b, in_p), lambda i: (i, 0)),   # x tile
                    pl.BlockSpec((in_p, eh_p), lambda i: (0, 0)),     # packed W1
                    pl.BlockSpec((1, eh_p), lambda i: (0, 0)),        # packed b1
                    pl.BlockSpec((eh_p, eo_p), lambda i: (0, 0)),     # block-diag W2
                    pl.BlockSpec((1, eo_p), lambda i: (0, 0)),        # packed b2
                ],
                out_specs=pl.BlockSpec((tile_b, eo_p), lambda i: (i, 0)),
            ),
            compiler_params=pltpu.CompilerParams(
                dimension_semantics=("parallel",),
                vmem_limit_bytes=int(budget)),
            cost_estimate=cost,
        )(xp, w1p, b1p, w2p, b2p)
        out = out_padded[:B, :E * out_dim].reshape(B, E, out_dim)
        return jnp.transpose(out, (1, 0, 2))

    # -------- general path (large experts) --------
    hid_p, out_p = plan["hid_p"], plan["out_p"]
    w1p, b1p, w2p, b2p = plan["w1p"], plan["b1p"], plan["w2p"], plan["b2p"]
    # W1/W2 single-buffered (Buffered(1)); biases keep default double-buffer.
    resident = ((in_p * hid_p + hid_p * out_p) * itemsize
                + 2 * (hid_p + out_p) * 4)
    per_row_pipe = in_p * itemsize + out_p * out_isz
    per_row_scr = hid_p * 4 + hid_p * itemsize + out_p * 4
    if tile_b is None:
        tile_b = _pick_tile_b(B, per_row_pipe, per_row_scr, resident, budget)
        if E * (_round_up(B, tile_b) // tile_b) < 2 and b16 >= 32:
            tile_b = _round_up((b16 + 1) // 2, 16)
    B_p = _round_up(B, tile_b)
    xp = jnp.zeros((B_p, in_p), cdt).at[:B, :in_dim].set(x.astype(cdt))
    grid = (E, B_p // tile_b)   # weights change only on the outer axis
    # TODO(synk): swap to a (batch, E) grid (x resident, weights streamed) when
    #             E*bytes(x) > (B_p/tile_b)*bytes(W1+W2).
    cost = pl.CostEstimate(
        flops=2 * E * B_p * (in_p * hid_p + hid_p * out_p),
        transcendentals=0,
        bytes_accessed=int(E * xp.nbytes + w1p.nbytes + w2p.nbytes
                           + b1p.nbytes + b2p.nbytes
                           + E * B_p * out_p * out_isz))

    def call(single_buffer_weights):
        wkw = ({"pipeline_mode": pl.Buffered(1)} if single_buffer_weights
               else {})
        return pl.pallas_call(
            expert_kernel,
            out_shape=jax.ShapeDtypeStruct((E, B_p, out_p), out_dtype),
            grid_spec=pltpu.PrefetchScalarGridSpec(
                num_scalar_prefetch=0,
                grid=grid,
                in_specs=[
                    pl.BlockSpec((tile_b, in_p), lambda e, i: (i, 0)),
                    pl.BlockSpec((None, in_p, hid_p),
                                 lambda e, i: (e, 0, 0), **wkw),
                    pl.BlockSpec((None, 1, hid_p), lambda e, i: (e, 0, 0)),
                    pl.BlockSpec((None, hid_p, out_p),
                                 lambda e, i: (e, 0, 0), **wkw),
                    pl.BlockSpec((None, 1, out_p), lambda e, i: (e, 0, 0)),
                ],
                out_specs=pl.BlockSpec((None, tile_b, out_p),
                                       lambda e, i: (e, i, 0)),
            ),
            compiler_params=pltpu.CompilerParams(
                dimension_semantics=("parallel", "parallel"),
                vmem_limit_bytes=int(budget)),
            cost_estimate=cost,
        )(xp, w1p, b1p, w2p, b2p)

    try:
        # Weights change at most once per batch sweep -> single-buffer them.
        out_padded = call(True)
    except Exception:
        # Fallback for runtimes that reject Buffered(1): default double-buffer.
        out_padded = call(False)
    return out_padded[:, :B, :out_dim]


def experts_forward(x, w1, b1, w2, b2, *, tile_b=None,
                    compute_dtype=jnp.bfloat16, out_dtype=None):
    """One-shot fused multi-expert MLP: x[B,in] -> [E,B,out].

    In real MMOE use, call prepare_experts() once and reuse the plan across
    steps so weight pad/cast/pack stays out of the hot path.
    """
    plan = prepare_experts(w1, b1, w2, b2, compute_dtype=compute_dtype)
    return experts_apply(plan, x, tile_b=tile_b, out_dtype=out_dtype)


def expert_forward(x, w1, b1, w2, b2, **kw):
    """Single Expert (the PyTorch module): x[B,in], w1[in,hid], w2[hid,out]."""
    return experts_forward(x, w1[None], b1[None], w2[None], b2[None], **kw)[0]


def xavier_uniform(key, fan_out, fan_in, dtype=jnp.float32):
    # matches torch.nn.init.xavier_uniform_ on a [fan_out, fan_in] weight
    limit = (6.0 / (fan_in + fan_out)) ** 0.5
    return jax.random.uniform(key, (fan_out, fan_in), dtype,
                              minval=-limit, maxval=limit)


if __name__ == "__main__":
    # Expert(input_size=32, output_size=16, hidden_size=64), batch=8.
    B, IN, HID, OUT = 8, 32, 64, 16

    key = jax.random.PRNGKey(0)
    kx, k1, k2, kb1, kb2 = jax.random.split(key, 5)

    x = jax.random.normal(kx, (B, IN), jnp.float32)

    # PyTorch Linear stores weight as [out_features, in_features]; build it
    # that way (matching xavier fan-in/out), then transpose for the kernel.
    w1_pt = xavier_uniform(k1, HID, IN)    # fc1.weight [HID, IN]
    w2_pt = xavier_uniform(k2, OUT, HID)   # fc2.weight [OUT, HID]
    b1 = jax.random.uniform(kb1, (HID,), jnp.float32,
                            minval=-1.0 / IN ** 0.5, maxval=1.0 / IN ** 0.5)
    b2 = jax.random.uniform(kb2, (OUT,), jnp.float32,
                            minval=-1.0 / HID ** 0.5, maxval=1.0 / HID ** 0.5)

    w1 = w1_pt.T  # [IN, HID]
    w2 = w2_pt.T  # [HID, OUT]

    # ---- Single Expert (the module spec); lane-packed path with E=1 ----
    out = jax.block_until_ready(expert_forward(x, w1, b1, w2, b2))
    assert out.shape == (B, OUT)

    # Reference with the same bf16-in / f32-accumulate math as the kernel.
    xb, w1b, w2b = (a.astype(jnp.bfloat16) for a in (x, w1, w2))
    h_ref = jnp.maximum(
        jnp.dot(xb, w1b, preferred_element_type=jnp.float32) + b1, 0.0)
    ref_bf16 = jnp.dot(h_ref.astype(jnp.bfloat16), w2b,
                       preferred_element_type=jnp.float32) + b2
    assert jnp.allclose(out, ref_bf16, atol=1e-2, rtol=1e-2)

    # Pure-f32 PyTorch-semantics reference (loose tol: bf16 MXU inputs).
    ref_f32 = jnp.maximum(x @ w1 + b1, 0.0) @ w2 + b2
    assert jnp.allclose(out, ref_f32, atol=6e-2, rtol=6e-2)

    # ---- MMOE usage: E=3 small experts -> lane-packed path ----
    E = 3
    keys = jax.random.split(jax.random.PRNGKey(1), 2 * E)
    w1s = jnp.stack([xavier_uniform(keys[i], HID, IN).T for i in range(E)])
    w2s = jnp.stack([xavier_uniform(keys[E + i], OUT, HID).T
                     for i in range(E)])
    b1s = jnp.tile(b1[None], (E, 1))
    b2s = jnp.tile(b2[None], (E, 1))

    plan = prepare_experts(w1s, b1s, w2s, b2s)   # weights padded/packed once
    assert plan["mode"] == "packed"
    outs = jax.block_until_ready(experts_apply(plan, x))
    assert outs.shape == (E, B, OUT)
    for e in range(E):
        r = jnp.maximum(x @ w1s[e] + b1s[e], 0.0) @ w2s[e] + b2s[e]
        assert jnp.allclose(outs[e], r, atol=6e-2, rtol=6e-2)

    # ---- Larger experts -> general per-expert-tiled path (single-buffered W) ----
    E2, IN2, HID2, OUT2, B2 = 2, 128, 256, 256, 64
    keys2 = jax.random.split(jax.random.PRNGKey(2), 2 * E2 + 1)
    x2 = jax.random.normal(keys2[-1], (B2, IN2), jnp.float32)
    w1s2 = jnp.stack([xavier_uniform(keys2[i], HID2, IN2).T
                      for i in range(E2)])
    w2s2 = jnp.stack([xavier_uniform(keys2[E2 + i], OUT2, HID2).T
                      for i in range(E2)])
    b1s2 = jnp.zeros((E2, HID2), jnp.float32)
    b2s2 = jnp.zeros((E2, OUT2), jnp.float32)

    plan2 = prepare_experts(w1s2, b1s2, w2s2, b2s2)
    assert plan2["mode"] == "general"
    outs2 = jax.block_until_ready(experts_apply(plan2, x2))
    assert outs2.shape == (E2, B2, OUT2)
    for e in range(E2):
        hb = jnp.maximum(
            jnp.dot(x2.astype(jnp.bfloat16), w1s2[e].astype(jnp.bfloat16),
                    preferred_element_type=jnp.float32) + b1s2[e], 0.0)
        rb = jnp.dot(hb.astype(jnp.bfloat16), w2s2[e].astype(jnp.bfloat16),
                     preferred_element_type=jnp.float32) + b2s2[e]
        assert jnp.allclose(outs2[e], rb, atol=2e-2, rtol=2e-2)

    print("KERNEL_OK")
</pallas_src>

<mosaic_0001>
module attributes {stable_mosaic.version = 11 : i64} {
  func.func @expert_kernel(%arg0: i32, %arg1: memref<16x128xbf16, #tpu.memory_space<vmem>>, %arg2: memref<128x128xbf16, #tpu.memory_space<vmem>>, %arg3: memref<1x128xf32, #tpu.memory_space<vmem>>, %arg4: memref<128x128xbf16, #tpu.memory_space<vmem>>, %arg5: memref<1x128xf32, #tpu.memory_space<vmem>>, %arg6: memref<16x128xf32, #tpu.memory_space<vmem>>) attributes {dimension_semantics = [#tpu.dimension_semantics<parallel>], iteration_bounds = array<i64: 1>, scalar_prefetch = 0 : i64, scratch_operands = 0 : i64, tpu.core_type = #tpu.core_type<tc>, window_params = [{transform_indices = @transform_0, window_bounds = array<i64: 16, 128>}, {pipeline_mode = #tpu.pipeline_mode<synchronous>, transform_indices = @transform_1, window_bounds = array<i64: 128, 128>}, {pipeline_mode = #tpu.pipeline_mode<synchronous>, transform_indices = @transform_2, window_bounds = array<i64: 1, 128>}, {pipeline_mode = #tpu.pipeline_mode<synchronous>, transform_indices = @transform_3, window_bounds = array<i64: 128, 128>}, {pipeline_mode = #tpu.pipeline_mode<synchronous>, transform_indices = @transform_4, window_bounds = array<i64: 1, 128>}, {transform_indices = @transform_5, window_bounds = array<i64: 16, 128>}]} {
    %c0 = arith.constant 0 : index
    %c0_0 = arith.constant 0 : index
    %0 = vector.load %arg1[%c0, %c0_0] : memref<16x128xbf16, #tpu.memory_space<vmem>>, vector<16x128xbf16>
    %c0_1 = arith.constant 0 : index
    %c0_2 = arith.constant 0 : index
    %1 = vector.load %arg2[%c0_1, %c0_2] : memref<128x128xbf16, #tpu.memory_space<vmem>>, vector<128x128xbf16>
    %cst = arith.constant dense<0.000000e+00> : vector<16x128xf32>
    %2 = tpu.matmul %0, %1, %cst {dimension_numbers = #tpu.dot_dimension_numbers<[1], [0], [0], [1], [0, 0, 1, 1], [], []>} : vector<16x128xbf16>, vector<128x128xbf16>, vector<16x128xf32> -> vector<16x128xf32>
    %c0_3 = arith.constant 0 : index
    %c0_4 = arith.constant 0 : index
    %3 = vector.load %arg3[%c0_3, %c0_4] : memref<1x128xf32, #tpu.memory_space<vmem>>, vector<1x128xf32>
    %4 = vector.broadcast %3 : vector<1x128xf32> to vector<16x128xf32>
    %5 = arith.addf %2, %4 : vector<16x128xf32>
    %cst_5 = arith.constant 0.000000e+00 : f32
    %6 = vector.broadcast %cst_5 : f32 to vector<16x128xf32>
    %7 = arith.maximumf %5, %6 : vector<16x128xf32>
    %8 = arith.truncf %7 : vector<16x128xf32> to vector<16x128xbf16>
    %c0_6 = arith.constant 0 : index
    %c0_7 = arith.constant 0 : index
    %9 = vector.load %arg4[%c0_6, %c0_7] : memref<128x128xbf16, #tpu.memory_space<vmem>>, vector<128x128xbf16>
    %cst_8 = arith.constant dense<0.000000e+00> : vector<16x128xf32>
    %10 = tpu.matmul %8, %9, %cst_8 {dimension_numbers = #tpu.dot_dimension_numbers<[1], [0], [0], [1], [0, 0, 1, 1], [], []>} : vector<16x128xbf16>, vector<128x128xbf16>, vector<16x128xf32> -> vector<16x128xf32>
    %c0_9 = arith.constant 0 : index
    %c0_10 = arith.constant 0 : index
    %11 = vector.load %arg5[%c0_9, %c0_10] : memref<1x128xf32, #tpu.memory_space<vmem>>, vector<1x128xf32>
    %12 = vector.broadcast %11 : vector<1x128xf32> to vector<16x128xf32>
    %13 = arith.addf %10, %12 : vector<16x128xf32>
    %c0_11 = arith.constant 0 : index
    %c0_12 = arith.constant 0 : index
    %14 = vector.load %arg6[%c0_11, %c0_12] : memref<16x128xf32, #tpu.memory_space<vmem>>, vector<16x128xf32>
    tpu.vector_store %arg6[%c0_11, %c0_12], %13 {strides = array<i32>} : memref<16x128xf32, #tpu.memory_space<vmem>>, vector<16x128xf32>,
    return
  }
  func.func @transform_0(%arg0: i32) -> (i32, i32) {
    %c0_i32 = arith.constant 0 : i32
    %c0_i32_0 = arith.constant 0 : i32
    return %arg0, %c0_i32 : i32, i32
  }
  func.func @transform_1(%arg0: i32) -> (i32, i32) {
    %c0_i32 = arith.constant 0 : i32
    %c0_i32_0 = arith.constant 0 : i32
    %c0_i32_1 = arith.constant 0 : i32
    return %c0_i32, %c0_i32_0 : i32, i32
  }
  func.func @transform_2(%arg0: i32) -> (i32, i32) {
    %c0_i32 = arith.constant 0 : i32
    %c0_i32_0 = arith.constant 0 : i32
    %c0_i32_1 = arith.constant 0 : i32
    return %c0_i32, %c0_i32_0 : i32, i32
  }
  func.func @transform_3(%arg0: i32) -> (i32, i32) {
    %c0_i32 = arith.constant 0 : i32
    %c0_i32_0 = arith.constant 0 : i32
    %c0_i32_1 = arith.constant 0 : i32
    return %c0_i32, %c0_i32_0 : i32, i32
  }
  func.func @transform_4(%arg0: i32) -> (i32, i32) {
    %c0_i32 = arith.constant 0 : i32
    %c0_i32_0 = arith.constant 0 : i32
    %c0_i32_1 = arith.constant 0 : i32
    return %c0_i32, %c0_i32_0 : i32, i32
  }
  func.func @transform_5(%arg0: i32) -> (i32, i32) {
    %c0_i32 = arith.constant 0 : i32
    %c0_i32_0 = arith.constant 0 : i32
    return %arg0, %c0_i32 : i32, i32
  }
}

</mosaic_0001>

<llo_original>
// kernel: tpu_custom_call.1
$region0: #{tpu_custom_call.1}
  #allocation0 [shape = 'u32[]', space=smem, size = 0x4, offset = 0x4, fixed_abs, tag = 'smem constant byte address 0x4 - core index']
  #allocation1 [shape = 'u32[144,128]{1,0:T(1,128)}', space=vmem, size = 0x12000, scoped, tag = 'internal scratch']
  %s0 = inlined_call_operand.hbm [shape: bf16[16,128], index: 0, kind: input, shape index: {}]
  %s1 = inlined_call_operand.hbm [shape: bf16[128,128], index: 1, kind: input, shape index: {}]
  %s2 = inlined_call_operand.vmem [shape: f32[1,128], index: 2, kind: input, shape index: {}]
  %s3 = inlined_call_operand.hbm [shape: bf16[128,128], index: 3, kind: input, shape index: {}]
  %s4 = inlined_call_operand.vmem [shape: f32[1,128], index: 4, kind: input, shape index: {}]
  %s5 = inlined_call_operand.hbm [shape: f32[16,128], index: 5, kind: output, shape index: {}]
  %s6 = sld [smem:[#allocation0]]
  $region42: #{tpu_custom_call.1} parent=0
    _
  %s8 = ssub.s32 1, %s6
  %s9 = scalar_select 0, %s8, %s6
  $region1: #{tpu_custom_call.1} parent=0
    #allocation2 [shape = 'u8[4096]{0}', space=vmem, size = 0x1000, scoped, tag = 'input window, operand 0, single buffered']
    #allocation3 [shape = 's32[1]{0}', space=sflag, size = 0x4, scoped, tag = 'scoped memory for tpu_custom_call.1']
    #allocation4 [shape = 's32[1]{0}', space=sflag, size = 0x4, scoped, tag = 'scoped memory for tpu_custom_call.1']
    #allocation5 [shape = 'u8[32768]{0}', space=vmem, size = 0x8000, scoped, tag = 'input window, operand 1, single buffered']
    #allocation6 [shape = 's32[1]{0}', space=sflag, size = 0x4, scoped, tag = 'scoped memory for tpu_custom_call.1']
    #allocation7 [shape = 'u8[32768]{0}', space=vmem, size = 0x8000, scoped, tag = 'input window, operand 3, single buffered']
    #allocation8 [shape = 'u8[8192]{0}', space=vmem, size = 0x2000, scoped, tag = 'output window, operand 0, single buffered']
    %10 = vsyncpa [#allocation3], 0
    %11 = vsyncpa [#allocation6], 0
    %12 = vsyncpa [#allocation4], 0
    // Predicated region
    $region2: #{tpu_custom_call.1} parent=1 // pred_check
      _
    $region3: #{tpu_custom_call.1} parent=1 // pred_check_branch
      %14 = sbr.rel (0) target = $region5
    $region4: #{tpu_custom_call.1} parent=1 // pred_region
      %s16 = ssub.s32 128, 128
      %17 = vsyncadd [#allocation3], %s16
      %s18 = sshll.u32 [#allocation2], 4
      %s19 = int_to_ptr.vmem [resolvable:$true] %s18
      %24 = dma.hbm_to_vmem [thread:$0]  %s0, 128, %s19, [#allocation3], 64, 64, 4
    $region5: #{tpu_custom_call.1} parent=1 // pred_fallthru
      _
    // Predicated region
    $region6: #{tpu_custom_call.1} parent=1 // pred_check
      _
    $region7: #{tpu_custom_call.1} parent=1 // pred_check_branch
      %26 = sbr.rel (0) target = $region9
    $region8: #{tpu_custom_call.1} parent=1 // pred_region
      %s28 = ssub.s32 1024, 1024
      %29 = vsyncadd [#allocation6], %s28
      %s30 = sshll.u32 [#allocation5], 4
      %s31 = int_to_ptr.vmem [resolvable:$true] %s30
      %36 = dma.hbm_to_vmem [thread:$0]  %s1, 1024, %s31, [#allocation6], 64, 64, 4
    $region9: #{tpu_custom_call.1} parent=1 // pred_fallthru
      _
    // Predicated region
    $region10: #{tpu_custom_call.1} parent=1 // pred_check
      _
    $region11: #{tpu_custom_call.1} parent=1 // pred_check_branch
      %38 = sbr.rel (0) target = $region13
    $region12: #{tpu_custom_call.1} parent=1 // pred_region
      _
    $region13: #{tpu_custom_call.1} parent=1 // pred_fallthru
      _
    // Predicated region
    $region14: #{tpu_custom_call.1} parent=1 // pred_check
      _
    $region15: #{tpu_custom_call.1} parent=1 // pred_check_branch
      %40 = sbr.rel (0) target = $region17
    $region16: #{tpu_custom_call.1} parent=1 // pred_region
      %s42 = ssub.s32 1024, 1024
      %43 = vsyncadd [#allocation6], %s42
      %s44 = sshll.u32 [#allocation7], 4
      %s45 = int_to_ptr.vmem [resolvable:$true] %s44
      %50 = dma.hbm_to_vmem [thread:$0]  %s3, 1024, %s45, [#allocation6], 64, 64, 4
    $region17: #{tpu_custom_call.1} parent=1 // pred_fallthru
      _
    // Predicated region
    $region18: #{tpu_custom_call.1} parent=1 // pred_check
      _
    $region19: #{tpu_custom_call.1} parent=1 // pred_check_branch
      %52 = sbr.rel (0) target = $region21
    $region20: #{tpu_custom_call.1} parent=1 // pred_region
      _
    $region21: #{tpu_custom_call.1} parent=1 // pred_fallthru
      _
    // Predicated region
    $region22: #{tpu_custom_call.1} parent=1 // pred_check
      _
    $region23: #{tpu_custom_call.1} parent=1 // pred_check_branch
      %54 = sbr.rel (0) target = $region25
    $region24: #{tpu_custom_call.1} parent=1 // pred_region
      %55 = dma.done [#allocation3], 128
    $region25: #{tpu_custom_call.1} parent=1 // pred_fallthru
      _
    // Predicated region
    $region26: #{tpu_custom_call.1} parent=1 // pred_check
      _
    $region27: #{tpu_custom_call.1} parent=1 // pred_check_branch
      %57 = sbr.rel (0) target = $region29
    $region28: #{tpu_custom_call.1} parent=1 // pred_region
      %58 = dma.done [#allocation6], 1024
    $region29: #{tpu_custom_call.1} parent=1 // pred_fallthru
      _
    // Predicated region
    $region30: #{tpu_custom_call.1} parent=1 // pred_check
      _
    $region31: #{tpu_custom_call.1} parent=1 // pred_check_branch
      %60 = sbr.rel (0) target = $region33
    $region32: #{tpu_custom_call.1} parent=1 // pred_region
      %61 = dma.done [#allocation6], 1024
    $region33: #{tpu_custom_call.1} parent=1 // pred_fallthru
      _
    %v63 = vld [vmem:[#allocation2] sm:$0xf]
    %v64 = vld [vmem:[#allocation2 + $0x4] sm:$0xf]
    %v65 = vld [vmem:[#allocation5] sm:$0xf]
    %v66 = vld [vmem:[#allocation5 + $0x4] sm:$0xf]
    %v67 = vld [vmem:[#allocation5 + $0x8] sm:$0xf]
    %v68 = vld [vmem:[#allocation5 + $0xc] sm:$0xf]
    %v69 = vld [vmem:[#allocation5 + $0x10] sm:$0xf]
    %v70 = vld [vmem:[#allocation5 + $0x14] sm:$0xf]
    %v71 = vld [vmem:[#allocation5 + $0x18] sm:$0xf]
    %v72 = vld [vmem:[#allocation5 + $0x1c] sm:$0xf]
    %v73 = vld [vmem:[#allocation5 + $0x20] sm:$0xf]
    %v74 = vld [vmem:[#allocation5 + $0x24] sm:$0xf]
    %v75 = vld [vmem:[#allocation5 + $0x28] sm:$0xf]
    %v76 = vld [vmem:[#allocation5 + $0x2c] sm:$0xf]
    %v77 = vld [vmem:[#allocation5 + $0x30] sm:$0xf]
    %v78 = vld [vmem:[#allocation5 + $0x34] sm:$0xf]
    %v79 = vld [vmem:[#allocation5 + $0x38] sm:$0xf]
    %v80 = vld [vmem:[#allocation5 + $0x3c] sm:$0xf]
    %v81 = vld [vmem:[%s2] sm:$0x1]
    %v83 = vlaneseq
    %v84 = vshrl.u32 %v83, 7
    %v85 = vsub.s32 0, %v84
    %v86 = vrot.slane %v81, %v85
    %v90 = vunpack.c.l.b16 %v63
    %v91 = vunpack.c.l.b16 %v64
    %v92 = vpack.c.b16 %v91, %v90
    %v110 = vunpack.c.l.b16 %v65
    %v111 = vunpack.c.l.b16 %v66
    %v112 = vunpack.c.l.b16 %v67
    %v113 = vunpack.c.l.b16 %v68
    %v114 = vunpack.c.l.b16 %v69
    %v115 = vunpack.c.l.b16 %v70
    %v116 = vunpack.c.l.b16 %v71
    %v117 = vunpack.c.l.b16 %v72
    %v118 = vunpack.c.l.b16 %v73
    %v119 = vunpack.c.l.b16 %v74
    %v120 = vunpack.c.l.b16 %v75
    %v121 = vunpack.c.l.b16 %v76
    %v122 = vunpack.c.l.b16 %v77
    %v123 = vunpack.c.l.b16 %v78
    %v124 = vunpack.c.l.b16 %v79
    %v125 = vunpack.c.l.b16 %v80
    %v126 = vpack.c.b16 %v111, %v110
    %v127 = vpack.c.b16 %v113, %v112
    %v128 = vpack.c.b16 %v115, %v114
    %v129 = vpack.c.b16 %v117, %v116
    %v130 = vpack.c.b16 %v119, %v118
    %v131 = vpack.c.b16 %v121, %v120
    %v132 = vpack.c.b16 %v123, %v122
    %v133 = vpack.c.b16 %v125, %v124
    %142 = vmatprep.subr.bf16.mxu0 0
    %143 = vmatpush1.bf16.msra.mxu0 %v126
    %144 = vmatprep.subr.bf16.mxu0 0
    %145 = vmatpush1.bf16.msra.mxu0 %v127
    %146 = vmatprep.subr.bf16.mxu0 0
    %147 = vmatpush1.bf16.msra.mxu0 %v128
    %148 = vmatprep.subr.bf16.mxu0 0
    %149 = vmatpush1.bf16.msra.mxu0 %v129
    %150 = vmatprep.subr.bf16.mxu0 0
    %151 = vmatpush1.bf16.msra.mxu0 %v130
    %152 = vmatprep.subr.bf16.mxu0 0
    %153 = vmatpush1.bf16.msra.mxu0 %v131
    %154 = vmatprep.subr.bf16.mxu0 0
    %155 = vmatpush1.bf16.msra.mxu0 %v132
    %156 = vmatprep.subr.bf16.mxu0 0
    %157 = vmatpush1.bf16.msra.mxu0 %v133
    %158 = vmatprep.subr.bf16.mxu0 0
    %159 = vmatpush1.bf16.msra.mxu0 0
    %160 = vmatprep.subr.bf16.mxu0 0
    %161 = vmatpush1.bf16.msra.mxu0 0
    %162 = vmatprep.subr.bf16.mxu0 0
    %163 = vmatpush1.bf16.msra.mxu0 0
    %164 = vmatprep.subr.bf16.mxu0 0
    %165 = vmatpush1.bf16.msra.mxu0 0
    %166 = vmatprep.subr.bf16.mxu0 0
    %167 = vmatpush1.bf16.msra.mxu0 0
    %168 = vmatprep.subr.bf16.mxu0 0
    %169 = vmatpush1.bf16.msra.mxu0 0
    %170 = vmatprep.subr.bf16.mxu0 0
    %171 = vmatpush1.bf16.msra.mxu0 0
    %172 = vmatprep.subr.bf16.mxu0 0
    %173 = vmatpush1.bf16.msra.mxu0 0
    %174 = vmatprep.mubr.bf16.mxu0 0
    %175 = vmatmul.mubr.bf16.gmra.mrb[0].mxu0 %v92
    %v176 = vpop.f32.mrb[0].mxu0
    %v177 = vadd.f32 %v86, %v176
    %v178 = vpop.f32.mrb[0].mxu0
    %v179 = vpop.f32.mrb[0].mxu0
    %v180 = vadd.f32 %v86, %v179
    %v181 = vpop.f32.mrb[0].mxu0
    %182 = vdwg.mxu0
    %v183 = vmax.f32 %v177, 0.0
    %v184 = vmax.f32 %v180, 0.0
    %v185 = vpack.c.bf16 %v184, %v183
    %v186 = vld [vmem:[#allocation7] sm:$0xf]
    %v187 = vld [vmem:[#allocation7 + $0x4] sm:$0xf]
    %v188 = vld [vmem:[#allocation7 + $0x8] sm:$0xf]
    %v189 = vld [vmem:[#allocation7 + $0xc] sm:$0xf]
    %v190 = vld [vmem:[#allocation7 + $0x10] sm:$0xf]
    %v191 = vld [vmem:[#allocation7 + $0x14] sm:$0xf]
    %v192 = vld [vmem:[#allocation7 + $0x18] sm:$0xf]
    %v193 = vld [vmem:[#allocation7 + $0x1c] sm:$0xf]
    %v194 = vld [vmem:[#allocation7 + $0x20] sm:$0xf]
    %v195 = vld [vmem:[#allocation7 + $0x24] sm:$0xf]
    %v196 = vld [vmem:[#allocation7 + $0x28] sm:$0xf]
    %v197 = vld [vmem:[#allocation7 + $0x2c] sm:$0xf]
    %v198 = vld [vmem:[#allocation7 + $0x30] sm:$0xf]
    %v199 = vld [vmem:[#allocation7 + $0x34] sm:$0xf]
    %v200 = vld [vmem:[#allocation7 + $0x38] sm:$0xf]
    %v201 = vld [vmem:[#allocation7 + $0x3c] sm:$0xf]
    %v202 = vld [vmem:[%s4] sm:$0x1]
    %v204 = vlaneseq
    %v205 = vshrl.u32 %v204, 7
    %v206 = vsub.s32 0, %v205
    %v207 = vrot.slane %v202, %v206
    %v225 = vunpack.c.l.b16 %v186
    %v226 = vunpack.c.l.b16 %v187
    %v227 = vunpack.c.l.b16 %v188
    %v228 = vunpack.c.l.b16 %v189
    %v229 = vunpack.c.l.b16 %v190
    %v230 = vunpack.c.l.b16 %v191
    %v231 = vunpack.c.l.b16 %v192
    %v232 = vunpack.c.l.b16 %v193
    %v233 = vunpack.c.l.b16 %v194
    %v234 = vunpack.c.l.b16 %v195
    %v235 = vunpack.c.l.b16 %v196
    %v236 = vunpack.c.l.b16 %v197
    %v237 = vunpack.c.l.b16 %v198
    %v238 = vunpack.c.l.b16 %v199
    %v239 = vunpack.c.l.b16 %v200
    %v240 = vunpack.c.l.b16 %v201
    %v241 = vpack.c.b16 %v226, %v225
    %v242 = vpack.c.b16 %v228, %v227
    %v243 = vpack.c.b16 %v230, %v229
    %v244 = vpack.c.b16 %v232, %v231
    %v245 = vpack.c.b16 %v234, %v233
    %v246 = vpack.c.b16 %v236, %v235
    %v247 = vpack.c.b16 %v238, %v237
    %v248 = vpack.c.b16 %v240, %v239
    %257 = vmatprep.subr.bf16.mxu0 0
    %258 = vmatpush1.bf16.msra.mxu0 %v241
    %259 = vmatprep.subr.bf16.mxu0 0
    %260 = vmatpush1.bf16.msra.mxu0 %v242
    %261 = vmatprep.subr.bf16.mxu0 0
    %262 = vmatpush1.bf16.msra.mxu0 %v243
    %263 = vmatprep.subr.bf16.mxu0 0
    %264 = vmatpush1.bf16.msra.mxu0 %v244
    %265 = vmatprep.subr.bf16.mxu0 0
    %266 = vmatpush1.bf16.msra.mxu0 %v245
    %267 = vmatprep.subr.bf16.mxu0 0
    %268 = vmatpush1.bf16.msra.mxu0 %v246
    %269 = vmatprep.subr.bf16.mxu0 0
    %270 = vmatpush1.bf16.msra.mxu0 %v247
    %271 = vmatprep.subr.bf16.mxu0 0
    %272 = vmatpush1.bf16.msra.mxu0 %v248
    %273 = vmatprep.subr.bf16.mxu0 0
    %274 = vmatpush1.bf16.msra.mxu0 0
    %275 = vmatprep.subr.bf16.mxu0 0
    %276 = vmatpush1.bf16.msra.mxu0 0
    %277 = vmatprep.subr.bf16.mxu0 0
    %278 = vmatpush1.bf16.msra.mxu0 0
    %279 = vmatprep.subr.bf16.mxu0 0
    %280 = vmatpush1.bf16.msra.mxu0 0
    %281 = vmatprep.subr.bf16.mxu0 0
    %282 = vmatpush1.bf16.msra.mxu0 0
    %283 = vmatprep.subr.bf16.mxu0 0
    %284 = vmatpush1.bf16.msra.mxu0 0
    %285 = vmatprep.subr.bf16.mxu0 0
    %286 = vmatpush1.bf16.msra.mxu0 0
    %287 = vmatprep.subr.bf16.mxu0 0
    %288 = vmatpush1.bf16.msra.mxu0 0
    %289 = vmatprep.mubr.bf16.mxu0 0
    %290 = vmatmul.mubr.bf16.gmra.mrb[0].mxu0 %v185
    %v291 = vpop.f32.mrb[0].mxu0
    %v292 = vadd.f32 %v207, %v291
    %v293 = vpop.f32.mrb[0].mxu0
    %v294 = vpop.f32.mrb[0].mxu0
    %v295 = vadd.f32 %v207, %v294
    %v296 = vpop.f32.mrb[0].mxu0
    %297 = vdwg.mxu0
    %298 = vst [vmem:[#allocation8] sm:$0xff] %v292
    %299 = vst [vmem:[#allocation8 + $0x8] sm:$0xff] %v295
    // Predicated region
    $region34: #{tpu_custom_call.1} parent=1 // pred_check
      _
    $region35: #{tpu_custom_call.1} parent=1 // pred_check_branch
      %301 = sbr.rel (0) target = $region37
    $region36: #{tpu_custom_call.1} parent=1 // pred_region
      %s303 = ssub.s32 256, 256
      %304 = vsyncadd [#allocation4], %s303
      %s305 = sshll.u32 [#allocation8], 4
      %s306 = int_to_ptr.vmem [resolvable:$true] %s305
      %311 = dma.vmem_to_hbm [thread:$0]  %s306, 256, %s5, [#allocation4], 128, 128, 8
    $region37: #{tpu_custom_call.1} parent=1 // pred_fallthru
      _
    // Predicated region
    $region38: #{tpu_custom_call.1} parent=1 // pred_check
      _
    $region39: #{tpu_custom_call.1} parent=1 // pred_check_branch
      %313 = sbr.rel (0) target = $region41
    $region40: #{tpu_custom_call.1} parent=1 // pred_region
      %314 = dma.done [#allocation4], 256
    $region41: #{tpu_custom_call.1} parent=1 // pred_fallthru
      _
    %315 = vsyncpa [#allocation3], 1
    %316 = vsyncpa [#allocation6], 1
    %317 = vsyncpa [#allocation4], 1

</llo_original>
